<compile_context>
chip_gen: v7x
topology: tpu7x:2x2x1
jax: 0.10.0
libtpu: 0.0.40
codegen_flags: <defaults>
</compile_context>

<pallas_src>
import functools

import jax
import jax.numpy as jnp
from jax.experimental import pallas as pl
from jax.experimental.pallas import tpu as pltpu


def _round_up(x: int, m: int) -> int:
    return ((x + m - 1) // m) * m


def _physical_vmem_bytes() -> int:
    """Per-core VMEM capacity (128 MiB on v5e/v6e, 64 MiB on v7x)."""
    try:
        return int(pltpu.get_tpu_info().vmem_capacity_bytes)
    except Exception:
        return 64 << 20  # conservative floor (v7x per-TensorCore VMEM)


def _shard_embedding_kernel(vb_ref, idx_ref, w_hbm_ref, out_ref, w_vmem, dma_sem,
                            *, chunk_vocab: int):
    """One token tile of the vocab-sharded embedding gather.

    vb_ref   : SMEM int32[1]        scalar-prefetched vocab_begin of this shard
    idx_ref  : VMEM int32[T, 1]     this tile's global token indices
    w_hbm_ref: HBM  w_dtype[Vs, E]  shard table (memory_space=pl.ANY)
    out_ref  : VMEM w_dtype[T, E]   output tile (token-major, lane-dense E)
    w_vmem   : VMEM w_dtype[Vs, E]  persistent scratch holding the staged table
    dma_sem  : DMA semaphore for the one-time table staging copy
    """
    # Stage the shard table HBM -> VMEM once. The grid axis is "arbitrary"
    # (sequential), so iteration 0 runs first and the scratch persists across
    # all remaining token tiles.
    @pl.when(pl.program_id(0) == 0)
    def _():
        cp = pltpu.make_async_copy(w_hbm_ref, w_vmem, dma_sem)
        cp.start()
        cp.wait()

    T = out_ref.shape[0]
    Vs, _E = w_vmem.shape

    vocab_begin = vb_ref[0]
    local = idx_ref[...] - vocab_begin                 # (T, 1) int32
    valid = (local >= 0) & (local < Vs)                # (T, 1) in-shard mask
    # Out-of-shard sentinel: column Vs never exists, so those one-hot rows are
    # all zeros -> the gather and the out-of-shard zero-fill fuse into one MXU
    # matmul, and the one-hot build is a single compare + cast.
    safe = jnp.where(valid, local, Vs)                 # (T, 1) int32

    # Chunked one-hot matmul over the vocab dim (static, unrolled at trace).
    # TODO(synk): crossover to a row-gather path for large Vs (see file header).
    acc = None
    k0 = 0
    while k0 < Vs:
        ck = min(chunk_vocab, Vs - k0)
        col = jax.lax.broadcasted_iota(jnp.int32, (T, ck), 1) + k0
        onehot = (safe == col).astype(w_vmem.dtype)    # (T, ck), one 1 per valid row
        part = jnp.dot(onehot, w_vmem[k0:k0 + ck, :],
                       preferred_element_type=out_ref.dtype)
        acc = part if acc is None else acc + part
        k0 += ck
    out_ref[...] = acc


def shard_embedding_forward(x, shard_weight, *, vocab_begin,
                            max_tile_tokens: int = 512, chunk_vocab: int = 512):
    """Per-shard forward: rows of `shard_weight` for in-shard tokens, zeros for
    out-of-shard tokens. x: int indices, any shape. Returns (*x.shape, E)."""
    Vs, E = shard_weight.shape
    orig_shape = x.shape
    idx = x.reshape(-1).astype(jnp.int32)
    n = idx.shape[0]
    itemsize = jnp.dtype(shard_weight.dtype).itemsize

    ck = max(8, min(int(chunk_vocab), Vs))

    phys_vmem = _physical_vmem_bytes()
    vmem_cap = int(0.9 * phys_vmem)          # leave headroom below physical VMEM

    # --- derive the token tile size T from the VMEM budget -------------------
    table_bytes = Vs * E * itemsize          # single staged copy in scratch
    per_token_bytes = (
        2 * E * itemsize                     # (T, E) output tile, double-buffered
        + 2 * 128 * 4                        # (T, 1) idx block lane-pads to (T,128), x2 bufs
        + E * max(itemsize, 4)               # accumulator / matmul result
        + (8 + itemsize) * ck                # per-chunk iota + mask + one-hot temps
    )
    headroom = 8 << 20                       # compiler-internal scratch / slack
    avail = vmem_cap - table_bytes - headroom

    if avail < 8 * per_token_bytes:
        # Resident-table fast path does not fit this generation's VMEM.
        # TODO(synk): HBM-resident DMA row-gather Pallas path; plain XLA gather
        # fallback keeps semantics correct in the meantime.
        local = idx - vocab_begin
        valid = (local >= 0) & (local < Vs)
        rows = jnp.take(shard_weight, jnp.where(valid, local, 0), axis=0)
        rows = jnp.where(valid[:, None], rows, 0).astype(shard_weight.dtype)
        return rows.reshape(*orig_shape, E)

    T = min(avail // per_token_bytes, int(max_tile_tokens), _round_up(n, 8))
    T = max(8, (int(T) // 8) * 8)

    n_pad = _round_up(n, T)
    if n_pad != n:
        # Pad with -1: out of range for every shard -> padded rows come out as
        # exact zeros (and are dropped by the [:n] slice anyway).
        idx = jnp.pad(idx, (0, n_pad - n), constant_values=-1)
    idx = idx.reshape(n_pad, 1)

    vb = jnp.array([vocab_begin], dtype=jnp.int32)

    vmem_needed = (
        table_bytes
        + 2 * T * E * itemsize               # output tile double buffer
        + 2 * T * 128 * 4                    # lane-padded idx tile double buffer
        + T * E * max(itemsize, 4)           # accumulator
        + (8 + itemsize) * T * ck            # per-chunk one-hot temporaries
    )
    vmem_limit = int(min(max(vmem_needed + headroom, 32 << 20), vmem_cap))

    grid_spec = pltpu.PrefetchScalarGridSpec(
        num_scalar_prefetch=1,               # only the vocab_begin scalar
        grid=(n_pad // T,),
        in_specs=[
            # Per-tile token indices in VMEM (no whole-array SMEM prefetch).
            pl.BlockSpec((T, 1), lambda i, vb_ref: (i, 0)),
            # Shard table stays in HBM; staged once into VMEM scratch in-kernel.
            pl.BlockSpec(memory_space=pl.ANY),
        ],
        out_specs=pl.BlockSpec((T, E), lambda i, vb_ref: (i, 0)),
        scratch_shapes=[
            pltpu.VMEM((Vs, E), shard_weight.dtype),   # resident table (1 copy)
            pltpu.SemaphoreType.DMA(()),
        ],
    )

    out_flat = pl.pallas_call(
        functools.partial(_shard_embedding_kernel, chunk_vocab=ck),
        out_shape=jax.ShapeDtypeStruct((n_pad, E), shard_weight.dtype),
        grid_spec=grid_spec,
        compiler_params=pltpu.CompilerParams(
            # "arbitrary": the table is staged at grid step 0 into per-core
            # scratch, so the token grid must run in order on one core.
            # TODO(synk): for very long token streams on v7x, split tokens across
            # the two TensorCores at the wrapper level so each core amortizes
            # its own table DMA.
            dimension_semantics=("arbitrary",),
            vmem_limit_bytes=vmem_limit,
        ),
    )(vb, idx, shard_weight)

    return out_flat[:n].reshape(*orig_shape, E)


def vocab_sharded_embedding_forward(x, full_weight, *, world_size,
                                    max_tile_tokens: int = 512,
                                    chunk_vocab: int = 512):
    """Full VocabShardedEmbedding forward with the gang simulated in-process:
    each rank's shard runs the Pallas kernel, then the gang all-reduce (sum) is
    emulated by summing the per-shard outputs (token support is disjoint)."""
    V, E = full_weight.shape
    assert V % world_size == 0, "num_embeddings must be a multiple of world_size"
    Vs = V // world_size

    out = None
    for rank in range(world_size):
        shard_w = full_weight[rank * Vs:(rank + 1) * Vs]
        y = shard_embedding_forward(
            x, shard_w, vocab_begin=rank * Vs,
            max_tile_tokens=max_tile_tokens, chunk_vocab=chunk_vocab,
        )
        out = y if out is None else out + y
    return out


def init_embedding_weight(key, num_embeddings: int, embed_dim: int, pad_idx):
    """fairseq2-style init: N(0, embed_dim**-0.5), pad row zeroed."""
    w = jax.random.normal(key, (num_embeddings, embed_dim), jnp.float32)
    w = w * (embed_dim ** -0.5)
    if pad_idx is not None:
        w = w.at[pad_idx].set(0.0)
    return w


if __name__ == "__main__":
    num_embeddings = 256   # full vocabulary size V
    embed_dim = 128        # E
    world_size = 2         # gang size -> shard vocab Vs = 128
    pad_idx = 1

    key = jax.random.PRNGKey(0)
    k_w, k_x = jax.random.split(key)

    weight = init_embedding_weight(k_w, num_embeddings, embed_dim, pad_idx)

    # Embedding indices, shape (batch=2, seq=8); spans both shards, includes pad.
    x = jax.random.randint(k_x, (2, 8), 0, num_embeddings, dtype=jnp.int32)
    x = x.at[0, -1].set(pad_idx)

    # Reference: plain full-table gather (exact PyTorch F.embedding forward).
    ref = jnp.take(weight, x, axis=0)

    out = vocab_sharded_embedding_forward(x, weight, world_size=world_size)
    out = jax.block_until_ready(out)
    assert out.shape == (*x.shape, embed_dim), out.shape
    assert out.dtype == weight.dtype
    assert jnp.allclose(out, ref, atol=1e-5, rtol=1e-5), "mismatch vs reference gather"
    # pad_idx row must be all zeros in the output (zero-initialized row).
    assert jnp.all(out[0, -1] == 0.0)

    # Exercise a multi-tile grid (scratch table persists across grid steps) and
    # a multi-chunk vocab contraction.
    out_small = jax.block_until_ready(
        vocab_sharded_embedding_forward(
            x, weight, world_size=world_size, max_tile_tokens=8, chunk_vocab=64)
    )
    assert jnp.allclose(out_small, ref, atol=1e-5, rtol=1e-5), "mismatch (tiled/chunked)"

    # bf16 weights: halves table residency/HBM bytes, accumulates in bf16 (exact).
    w_bf16 = weight.astype(jnp.bfloat16)
    out_bf16 = jax.block_until_ready(
        vocab_sharded_embedding_forward(x, w_bf16, world_size=world_size)
    )
    ref_bf16 = jnp.take(w_bf16, x, axis=0)
    assert out_bf16.dtype == jnp.bfloat16
    assert jnp.allclose(out_bf16.astype(jnp.float32), ref_bf16.astype(jnp.float32))

    print("KERNEL_OK")
</pallas_src>

<mosaic_0001>
module attributes {stable_mosaic.version = 11 : i64} {
  func.func @_shard_embedding_kernel(%arg0: i32, %arg1: memref<1xi32, #tpu.memory_space<smem>>, %arg2: memref<16x1xi32, #tpu.memory_space<vmem>>, %arg3: memref<128x128xf32, #tpu.memory_space<any>>, %arg4: memref<16x128xf32, #tpu.memory_space<vmem>>, %arg5: memref<128x128xf32, #tpu.memory_space<vmem>>, %arg6: memref<!tpu.dma_semaphore, #tpu.memory_space<semaphore_mem>>) attributes {dimension_semantics = [#tpu.dimension_semantics<arbitrary>], iteration_bounds = array<i64: 1>, scalar_prefetch = 1 : i64, scratch_operands = 2 : i64, tpu.core_type = #tpu.core_type<tc>, window_params = [{transform_indices = @transform_0, window_bounds = array<i64: 16, 1>}, {}, {transform_indices = @transform_2, window_bounds = array<i64: 16, 128>}]} {
    %c0_i32 = arith.constant 0 : i32
    %0 = arith.cmpi eq, %arg0, %c0_i32 : i32
    %1 = arith.extui %0 : i1 to i32
    %c0_i32_0 = arith.constant 0 : i32
    %2 = arith.cmpi ne, %1, %c0_i32_0 : i32
    scf.if %2 {
      tpu.enqueue_dma source(%arg3 : memref<128x128xf32, #tpu.memory_space<any>>) target(%arg5 : memref<128x128xf32, #tpu.memory_space<vmem>>) target_semaphore(%arg6 : memref<!tpu.dma_semaphore, #tpu.memory_space<semaphore_mem>>)
      tpu.wait_dma2 semaphore(%arg6 : memref<!tpu.dma_semaphore, #tpu.memory_space<semaphore_mem>>) src(%arg3 : memref<128x128xf32, #tpu.memory_space<any>>) dst(%arg5 : memref<128x128xf32, #tpu.memory_space<vmem>>)
    } else {
    }
    %c0 = arith.constant 0 : index
    %3 = memref.load %arg1[%c0] : memref<1xi32, #tpu.memory_space<smem>>
    %c0_1 = arith.constant 0 : index
    %c0_2 = arith.constant 0 : index
    %4 = vector.load %arg2[%c0_1, %c0_2] : memref<16x1xi32, #tpu.memory_space<vmem>>, vector<16x1xi32>
    %5 = vector.broadcast %3 : i32 to vector<16x1xi32>
    %6 = arith.subi %4, %5 : vector<16x1xi32>
    %c0_i32_3 = arith.constant 0 : i32
    %7 = vector.broadcast %c0_i32_3 : i32 to vector<16x1xi32>
    %8 = arith.cmpi sge, %6, %7 : vector<16x1xi32>
    %c128_i32 = arith.constant 128 : i32
    %9 = vector.broadcast %c128_i32 : i32 to vector<16x1xi32>
    %10 = arith.cmpi slt, %6, %9 : vector<16x1xi32>
    %11 = arith.andi %8, %10 : vector<16x1xi1>
    %c128_i32_4 = arith.constant 128 : i32
    %12 = vector.broadcast %c128_i32_4 : i32 to vector<16x1xi32>
    %13 = arith.select %11, %6, %12 : vector<16x1xi1>, vector<16x1xi32>
    %14 = tpu.iota {dimensions = array<i32: 1>} : vector<16x128xi32>
    %c0_i32_5 = arith.constant 0 : i32
    %15 = vector.broadcast %c0_i32_5 : i32 to vector<16x128xi32>
    %16 = arith.addi %14, %15 : vector<16x128xi32>
    %17 = vector.broadcast %13 : vector<16x1xi32> to vector<16x128xi32>
    %18 = arith.cmpi eq, %17, %16 : vector<16x128xi32>
    %19 = arith.extui %18 : vector<16x128xi1> to vector<16x128xi32>
    %20 = arith.sitofp %19 : vector<16x128xi32> to vector<16x128xf32>
    %c0_6 = arith.constant 0 : index
    %c0_7 = arith.constant 0 : index
    %21 = vector.load %arg5[%c0_6, %c0_7] : memref<128x128xf32, #tpu.memory_space<vmem>>, vector<128x128xf32>
    %cst = arith.constant dense<0.000000e+00> : vector<16x128xf32>
    %22 = tpu.matmul %20, %21, %cst {dimension_numbers = #tpu.dot_dimension_numbers<[1], [0], [0], [1], [0, 0, 1, 1], [], []>} : vector<16x128xf32>, vector<128x128xf32>, vector<16x128xf32> -> vector<16x128xf32>
    %c0_8 = arith.constant 0 : index
    %c0_9 = arith.constant 0 : index
    %23 = vector.load %arg4[%c0_8, %c0_9] : memref<16x128xf32, #tpu.memory_space<vmem>>, vector<16x128xf32>
    tpu.vector_store %arg4[%c0_8, %c0_9], %22 {strides = array<i32>} : memref<16x128xf32, #tpu.memory_space<vmem>>, vector<16x128xf32>,
    return
  }
  func.func @transform_0(%arg0: i32, %arg1: memref<1xi32, #tpu.memory_space<smem>>) -> (i32, i32) {
    %c0_i32 = arith.constant 0 : i32
    %c0_i32_0 = arith.constant 0 : i32
    return %arg0, %c0_i32 : i32, i32
  }
  func.func @transform_2(%arg0: i32, %arg1: memref<1xi32, #tpu.memory_space<smem>>) -> (i32, i32) {
    %c0_i32 = arith.constant 0 : i32
    %c0_i32_0 = arith.constant 0 : i32
    return %arg0, %c0_i32 : i32, i32
  }
}

</mosaic_0001>

<llo_original>
// kernel: tpu_custom_call.1
$region0: #{tpu_custom_call.1}
  #allocation0 [shape = 'u32[]', space=smem, size = 0x4, offset = 0x4, fixed_abs, tag = 'smem constant byte address 0x4 - core index']
  #allocation1 [shape = 'u32[144,128]{1,0:T(1,128)}', space=vmem, size = 0x12000, scoped, tag = 'internal scratch']
  #allocation2 [shape = 'f32[128,128]{1,0:T(8,128)}', space=vmem, size = 0x10000, scoped, tag = 'scratch operand']
  #allocation3 [shape = 's32[1]{0}', space=sflag, size = 0x4, scoped, tag = 'scratch operand']
  #allocation4 [shape = 's32[1]{0}', space=sflag, size = 0x4, scoped, tag = 'scoped memory for tpu_custom_call.1']
  #allocation5 [shape = 's32[1]{0:T(128)S(6)}', space=smem, size = 0x200, scoped, tag = 'prefetched SMEM operand 0']
  #allocation8 [shape = 's32[]', space=sflag, size = 0x4, offset = 0, fixed_abs, tag = 'sflag constant byte address 0x0 - dummy sync flag']
  #allocation9 [shape = 's32[]', space=sflag, size = 0x4, offset = 0, fixed_abs, tag = 'sflag constant byte address 0x0 - dummy sync flag']
  #allocation10 [shape = 'u32[]', space=smem, size = 0x4, offset = 0x44, fixed_abs, tag = 'smem constant byte address 0x44 - assertion arg 0']
  #allocation11 [shape = 'u32[]', space=smem, size = 0x4, offset = 0x48, fixed_abs, tag = 'smem constant byte address 0x48 - assertion arg 1']
  %s0 = inlined_call_operand.<no memory space> [shape: s32[1], index: 0, kind: input, shape index: {}]
  %s1 = inlined_call_operand.vmem [shape: s32[16,1], index: 1, kind: input, shape index: {}]
  %s2 = inlined_call_operand.hbm [shape: f32[128,128], index: 2, kind: input, shape index: {}]
  %s3 = inlined_call_operand.hbm [shape: f32[16,128], index: 3, kind: output, shape index: {}]
  %s4 = sld [smem:[#allocation0]]
  $region22: #{tpu_custom_call.1} parent=0
    _
  %s6 = ssub.s32 1, %s4
  %s7 = scalar_select 0, %s6, %s4
  %8 = sst [smem:[#allocation5]] %s0
  $region1: #{tpu_custom_call.1} parent=0
    #allocation6 [shape = 'u8[8192]{0}', space=vmem, size = 0x2000, scoped, tag = 'output window, operand 0, single buffered']
    #allocation7 [shape = 's32[1]{0}', space=sflag, size = 0x4, scoped, tag = 'scoped memory for tpu_custom_call.1']
    %9 = vsyncpa [#allocation7], 0
    // Predicated region
    $region2: #{tpu_custom_call.1} parent=1 // pred_check
      _
    $region3: #{tpu_custom_call.1} parent=1 // pred_check_branch
      %11 = sbr.rel (0) target = $region5
    $region4: #{tpu_custom_call.1} parent=1 // pred_region
      _
    $region5: #{tpu_custom_call.1} parent=1 // pred_fallthru
      _
    %p12 = scmp.eq.s32.totalorder 0, 0
    // Predicated region
    $region6: #{tpu_custom_call.1} parent=1 // pred_check
      %p13 = pneg %p12
    $region7: #{tpu_custom_call.1} parent=1 // pred_check_branch
      %15 = sbr.rel (%p13) target = $region9
    $region8: #{tpu_custom_call.1} parent=1 // pred_region
      // Predicated region
      $region10: #{tpu_custom_call.1} parent=8 // pred_check
        _
      $region11: #{tpu_custom_call.1} parent=8 // pred_check_branch
        %17 = sbr.rel target = $region13
      $region12: #{tpu_custom_call.1} parent=8 // pred_region
        %18 = sst [smem:[#allocation10]] [#allocation9]
        %19 = sst [smem:[#allocation11]] [#allocation8]
      $region13: #{tpu_custom_call.1} parent=8 // pred_fallthru
        _
      %21 = shalt.err (0)
      %s23 = sshll.u32 [#allocation2], 4
      %s24 = int_to_ptr.vmem [resolvable:$true] %s23
      %26 = dma.hbm_to_vmem [thread:$0]  %s2, 2048, %s24, [#allocation3]
      %s27 = smul.u32 128, 1
      %s28 = sshll.u32 %s27, 4
      %29 = dma.done [#allocation3], %s28
    $region9: #{tpu_custom_call.1} parent=1 // pred_fallthru
      _
    %s30 = sld [smem:[#allocation5]]
    %v31 = vld [vmem:[%s1] sm:$0xff]
    %v32 = vld [vmem:[%s1 + $0x8] sm:$0xff]
    %v33 = vstv %s30
    %v34 = vsub.s32 %v31, %v33
    %v35 = vsub.s32 %v32, %v33
    %vm36 = vcmp.ge.s32.totalorder %v34, 0
    %vm37 = vcmp.ge.s32.totalorder %v35, 0
    %vm38 = vcmp.lt.s32.totalorder %v34, 128
    %vm39 = vcmp.lt.s32.totalorder %v35, 128
    %vm40 = vmand %vm36, %vm38
    %vm41 = vmand %vm37, %vm39
    %v42 = vsel %vm40, %v34, 128
    %v43 = vsel %vm41, %v35, 128
    %v44 = vlaneseq
    %v45 = vand.u32 %v44, 127
    %46 = vset.pattern.permute.xlu0 0
    %47 = vperm.xlu0 %46, %v42
    %v48 = vpop.permute.xlu0 %47
    %49 = vset.pattern.permute.xlu0 0
    %50 = vperm.xlu0 %49, %v43
    %v51 = vpop.permute.xlu0 %50
    %vm52 = vcmp.eq.s32.totalorder %v48, %v45
    %vm53 = vcmp.eq.s32.totalorder %v51, %v45
    %v54 = vsel %vm52, 1, 0
    %v55 = vsel %vm53, 1, 0
    %v56 = vcvt.s32.f32 %v54
    %v57 = vcvt.s32.f32 %v55
    %v58 = vld [vmem:[#allocation2] sm:$0xff]
    %v59 = vld [vmem:[#allocation2 + $0x8] sm:$0xff]
    %v60 = vld [vmem:[#allocation2 + $0x10] sm:$0xff]
    %v61 = vld [vmem:[#allocation2 + $0x18] sm:$0xff]
    %v62 = vld [vmem:[#allocation2 + $0x20] sm:$0xff]
    %v63 = vld [vmem:[#allocation2 + $0x28] sm:$0xff]
    %v64 = vld [vmem:[#allocation2 + $0x30] sm:$0xff]
    %v65 = vld [vmem:[#allocation2 + $0x38] sm:$0xff]
    %v66 = vld [vmem:[#allocation2 + $0x40] sm:$0xff]
    %v67 = vld [vmem:[#allocation2 + $0x48] sm:$0xff]
    %v68 = vld [vmem:[#allocation2 + $0x50] sm:$0xff]
    %v69 = vld [vmem:[#allocation2 + $0x58] sm:$0xff]
    %v70 = vld [vmem:[#allocation2 + $0x60] sm:$0xff]
    %v71 = vld [vmem:[#allocation2 + $0x68] sm:$0xff]
    %v72 = vld [vmem:[#allocation2 + $0x70] sm:$0xff]
    %v73 = vld [vmem:[#allocation2 + $0x78] sm:$0xff]
    %74 = vmatprep.subr.mxu0 0.0
    %75 = vmatpush1.msra.mxu0 %v58
    %76 = vmatprep.subr.mxu0 0.0
    %77 = vmatpush1.msra.mxu0 %v59
    %78 = vmatprep.subr.mxu0 0.0
    %79 = vmatpush1.msra.mxu0 %v60
    %80 = vmatprep.subr.mxu0 0.0
    %81 = vmatpush1.msra.mxu0 %v61
    %82 = vmatprep.subr.mxu0 0.0
    %83 = vmatpush1.msra.mxu0 %v62
    %84 = vmatprep.subr.mxu0 0.0
    %85 = vmatpush1.msra.mxu0 %v63
    %86 = vmatprep.subr.mxu0 0.0
    %87 = vmatpush1.msra.mxu0 %v64
    %88 = vmatprep.subr.mxu0 0.0
    %89 = vmatpush1.msra.mxu0 %v65
    %90 = vmatprep.subr.mxu0 0.0
    %91 = vmatpush1.msra.mxu0 %v66
    %92 = vmatprep.subr.mxu0 0.0
    %93 = vmatpush1.msra.mxu0 %v67
    %94 = vmatprep.subr.mxu0 0.0
    %95 = vmatpush1.msra.mxu0 %v68
    %96 = vmatprep.subr.mxu0 0.0
    %97 = vmatpush1.msra.mxu0 %v69
    %98 = vmatprep.subr.mxu0 0.0
    %99 = vmatpush1.msra.mxu0 %v70
    %100 = vmatprep.subr.mxu0 0.0
    %101 = vmatpush1.msra.mxu0 %v71
    %102 = vmatprep.subr.mxu0 0.0
    %103 = vmatpush1.msra.mxu0 %v72
    %104 = vmatprep.subr.mxu0 0.0
    %105 = vmatpush1.msra.mxu0 %v73
    %106 = vmatprep.subr.mxu0 0.0
    %107 = vmatpush1.msra.mxu0 0.0
    %108 = vmatprep.subr.mxu0 0.0
    %109 = vmatpush1.msra.mxu0 0.0
    %110 = vmatprep.subr.mxu0 0.0
    %111 = vmatpush1.msra.mxu0 0.0
    %112 = vmatprep.subr.mxu0 0.0
    %113 = vmatpush1.msra.mxu0 0.0
    %114 = vmatprep.subr.mxu0 0.0
    %115 = vmatpush1.msra.mxu0 0.0
    %116 = vmatprep.subr.mxu0 0.0
    %117 = vmatpush1.msra.mxu0 0.0
    %118 = vmatprep.subr.mxu0 0.0
    %119 = vmatpush1.msra.mxu0 0.0
    %120 = vmatprep.subr.mxu0 0.0
    %121 = vmatpush1.msra.mxu0 0.0
    %122 = vmatprep.subr.mxu0 0.0
    %123 = vmatpush1.msra.mxu0 0.0
    %124 = vmatprep.subr.mxu0 0.0
    %125 = vmatpush1.msra.mxu0 0.0
    %126 = vmatprep.subr.mxu0 0.0
    %127 = vmatpush1.msra.mxu0 0.0
    %128 = vmatprep.subr.mxu0 0.0
    %129 = vmatpush1.msra.mxu0 0.0
    %130 = vmatprep.subr.mxu0 0.0
    %131 = vmatpush1.msra.mxu0 0.0
    %132 = vmatprep.subr.mxu0 0.0
    %133 = vmatpush1.msra.mxu0 0.0
    %134 = vmatprep.subr.mxu0 0.0
    %135 = vmatpush1.msra.mxu0 0.0
    %136 = vmatprep.subr.mxu0 0.0
    %137 = vmatpush1.msra.mxu0 0.0
    %138 = vmatprep.mubr.f32.mxu0 0.0
    %139 = vmatmul.mubr.f32.gmra.mrb[0].mxu0 %v56
    %v140 = vpop.f32.mrb[0].mxu0
    %v141 = vadd.f32 0.0, %v140
    %v142 = vpop.f32.mrb[0].mxu0
    %143 = vmatprep.mubr.f32.mxu0 0.0
    %144 = vmatmul.mubr.f32.gmra.mrb[0].mxu0 %v57
    %v145 = vpop.f32.mrb[0].mxu0
    %v146 = vadd.f32 0.0, %v145
    %v147 = vpop.f32.mrb[0].mxu0
    %148 = vdwg.mxu0
    %149 = vst [vmem:[#allocation6] sm:$0xff] %v141
    %150 = vst [vmem:[#allocation6 + $0x8] sm:$0xff] %v146
    // Predicated region
    $region14: #{tpu_custom_call.1} parent=1 // pred_check
      _
    $region15: #{tpu_custom_call.1} parent=1 // pred_check_branch
      %152 = sbr.rel (0) target = $region17
    $region16: #{tpu_custom_call.1} parent=1 // pred_region
      %s154 = ssub.s32 256, 256
      %155 = vsyncadd [#allocation7], %s154
      %s156 = sshll.u32 [#allocation6], 4
      %s157 = int_to_ptr.vmem [resolvable:$true] %s156
      %162 = dma.vmem_to_hbm [thread:$0]  %s157, 256, %s3, [#allocation7], 128, 128, 8
    $region17: #{tpu_custom_call.1} parent=1 // pred_fallthru
      _
    // Predicated region
    $region18: #{tpu_custom_call.1} parent=1 // pred_check
      _
    $region19: #{tpu_custom_call.1} parent=1 // pred_check_branch
      %164 = sbr.rel (0) target = $region21
    $region20: #{tpu_custom_call.1} parent=1 // pred_region
      %165 = dma.done [#allocation7], 256
    $region21: #{tpu_custom_call.1} parent=1 // pred_fallthru
      _
    %166 = vsyncpa [#allocation7], 1
  %167 = vsyncmov [#allocation3]
  %s168 = vpop.sfrf %167
  %p169 = scmp.eq.s32.totalorder %s168, 0
  %p170 = pneg %p169
  %172 = shalt.err (%p170)

</llo_original>
